<compile_context>
chip_gen: v6e
topology: v6e:2x2x1
jax: 0.10.0
libtpu: 0.0.40
codegen_flags: <defaults>
</compile_context>

<pallas_src>
import functools

import numpy as np
import jax
import jax.numpy as jnp
from jax import lax
from jax.experimental import pallas as pl
from jax.experimental.pallas import tpu as pltpu


# ----------------------------- weight preparation ------------------------------

def toeplitz_weights(w_hwio, W):
    """Expand a (3,3,cin,cout) HWIO kernel into 3 block-banded (W*cin, W*cout)
    matrices (one per dy) so a 3x3 'same' conv over lane-dense (H, W*cin) rows
    becomes 3 plain MXU matmuls.  SAME padding in W = the missing edge blocks.
    Host-side, done once at setup."""
    kh, kw, cin, cout = w_hwio.shape
    assert (kh, kw) == (3, 3)
    w_np = np.asarray(jax.device_get(w_hwio), dtype=np.float32)
    mats = np.zeros((3, W * cin, W * cout), np.float32)
    for dy in range(3):
        for dx in range(3):
            for w in range(W):
                ws = w + dx - 1              # input column feeding output column w
                if 0 <= ws < W:
                    mats[dy, ws * cin:(ws + 1) * cin,
                         w * cout:(w + 1) * cout] = w_np[dy, dx]
    return jnp.asarray(mats, dtype=jnp.bfloat16)        # (3, W*cin, W*cout)


# --------------------------- in-kernel helpers -------------------------------

def _shift_masks(N, H, WC, cin, fold):
    """Channel-shuffle masks in the lane-dense layout, computed once per call.
    Lane l holds channel l % cin;  c < fold -> right, fold <= c < 2*fold -> left."""
    lane = lax.broadcasted_iota(jnp.int32, (N, H, WC), 2)
    if cin & (cin - 1) == 0:
        chan = lane & (cin - 1)
    else:
        chan = lane % cin
    m_right = chan < fold
    m_left = jnp.logical_and(chan >= fold, chan < 2 * fold)
    return m_right, m_left


def _conv3x3_lane_dense(x, w_ref, xpad_ref, *, N, H, cout_lanes, relu):
    """3x3 'same' conv in lane-dense layout as 3 MXU matmuls (one per dy).

    x         : (N, H, W*cin)        activation (bf16)
    w_ref     : (3, W*cin, W*cout)   bf16 block-banded weights (dx folded in)
    xpad_ref  : (N, H+2, W*cin)      bf16 VMEM halo scratch, border rows zero
    returns   : (N, H, W*cout)       f32
    """
    WC = xpad_ref.shape[-1]
    xpad_ref[:, 1:H + 1, :] = x.astype(xpad_ref.dtype)
    acc = jnp.zeros((N * H, cout_lanes), jnp.float32)
    for dy in range(3):                                   # unrolled, static
        lhs = xpad_ref[:, dy:dy + H, :].reshape(N * H, WC)
        acc = acc + jnp.dot(lhs, w_ref[dy], preferred_element_type=jnp.float32)
    if relu:
        acc = jnp.maximum(acc, 0.0)
    return acc.reshape(N, H, cout_lanes)


# ------------------------------ Pallas kernels --------------------------------

def _shiftconv_kernel(l_ref, c_ref, r_ref, w_ref, y_ref, xpad,
                      *, N, H, cin, fold):
    """Warm-up step (memconv.c1 only): y = ReLU(conv1(shift(left, center, right)))."""
    WC = l_ref.shape[-1]
    m_r, m_l = _shift_masks(N, H, WC, cin, fold)
    zrow = jnp.zeros((N, 1, WC), xpad.dtype)
    xpad[:, 0:1, :] = zrow
    xpad[:, H + 1:H + 2, :] = zrow
    x = jnp.where(m_r, r_ref[...], jnp.where(m_l, l_ref[...], c_ref[...]))
    y = _conv3x3_lane_dense(x, w_ref, xpad, N=N, H=H, cout_lanes=WC, relu=True)
    y_ref[...] = y.astype(y_ref.dtype)


def _upblock_fused_kernel(l1_ref, c1_ref, r1_ref, l2_ref, c2_ref,
                          w1_ref, w2_ref, w3_ref, y_ref, o_ref, xpad,
                          *, N, H, cin, fold):
    """Steady-state frame, fully fused:
        y = ReLU(conv1(shift(l1, c1, r1)))     (memconv.c1 + relu1)
        z = ReLU(conv2(shift(l2, c2, y)))      (memconv.c2 + relu2)
        o = conv3(z)                           (convblock Conv2d, pre-PixelShuffle)
    y is also emitted: it becomes memconv.c2's streaming state next frame."""
    WC = r1_ref.shape[-1]
    WO = o_ref.shape[-1]
    m_r, m_l = _shift_masks(N, H, WC, cin, fold)
    zrow = jnp.zeros((N, 1, WC), xpad.dtype)
    xpad[:, 0:1, :] = zrow                     # borders zeroed once per call;
    xpad[:, H + 1:H + 2, :] = zrow             # interior rewritten per conv.
    conv = functools.partial(_conv3x3_lane_dense, xpad_ref=xpad, N=N, H=H)

    x1 = jnp.where(m_r, r1_ref[...], jnp.where(m_l, l1_ref[...], c1_ref[...]))
    y = conv(x1, w1_ref, cout_lanes=WC, relu=True)
    y_bf = y.astype(jnp.bfloat16)
    y_ref[...] = y_bf

    x2 = jnp.where(m_r, y_bf, jnp.where(m_l, l2_ref[...], c2_ref[...]))
    z = conv(x2, w2_ref, cout_lanes=WC, relu=True)

    o = conv(z.astype(jnp.bfloat16), w3_ref, cout_lanes=WO, relu=False)
    o_ref[...] = o.astype(o_ref.dtype)


# ------------------------------- wrappers -------------------------------------

def shiftconv_pallas(left, center, right, w_toep, *, cin):
    """ShiftConv + Conv2d(3x3, same, no bias) + ReLU on lane-dense (N,H,W*cin) bf16."""
    N, H, WC = center.shape
    kernel = functools.partial(_shiftconv_kernel, N=N, H=H, cin=cin, fold=cin // 8)
    act = pl.BlockSpec((N, H, WC), lambda i: (0, 0, 0))
    return pl.pallas_call(
        kernel,
        out_shape=jax.ShapeDtypeStruct((N, H, WC), jnp.bfloat16),
        grid_spec=pltpu.PrefetchScalarGridSpec(
            num_scalar_prefetch=0,
            grid=(1,),                                    # batch folded into one step
            in_specs=[act, act, act,
                      pl.BlockSpec(tuple(w_toep.shape), lambda i: (0, 0, 0))],
            out_specs=act,
            scratch_shapes=[pltpu.VMEM((N, H + 2, WC), jnp.bfloat16)],
        ),
        compiler_params=pltpu.CompilerParams(dimension_semantics=("arbitrary",)),
        cost_estimate=pl.CostEstimate(
            flops=2 * 3 * N * H * WC * WC,
            transcendentals=0,
            bytes_accessed=4 * N * H * WC * 2 + int(w_toep.size) * 2),
    )(left, center, right, w_toep)


def upblock_fused_pallas(l1, c1, r1, l2, c2, w1t, w2t, w3t, *, cin):
    """Fused steady-state UpBlock frame.  Returns (y, o):
       y: conv1+ReLU output (next frame's c2 state, bf16 lane-dense),
       o: conv3 output (pre-PixelShuffle, f32 lane-dense)."""
    N, H, WC = r1.shape
    WO = w3t.shape[-1]
    kernel = functools.partial(_upblock_fused_kernel, N=N, H=H, cin=cin,
                               fold=cin // 8)
    act = pl.BlockSpec((N, H, WC), lambda i: (0, 0, 0))
    w_small = pl.BlockSpec((3, WC, WC), lambda i: (0, 0, 0))
    w_big = pl.BlockSpec((3, WC, WO), lambda i: (0, 0, 0))
    return pl.pallas_call(
        kernel,
        out_shape=(jax.ShapeDtypeStruct((N, H, WC), jnp.bfloat16),
                   jax.ShapeDtypeStruct((N, H, WO), jnp.float32)),
        grid_spec=pltpu.PrefetchScalarGridSpec(
            num_scalar_prefetch=0,
            grid=(1,),                                    # batch folded into one step
            in_specs=[act] * 5 + [w_small, w_small, w_big],
            out_specs=(act, pl.BlockSpec((N, H, WO), lambda i: (0, 0, 0))),
            scratch_shapes=[pltpu.VMEM((N, H + 2, WC), jnp.bfloat16)],
        ),
        compiler_params=pltpu.CompilerParams(dimension_semantics=("arbitrary",)),
        cost_estimate=pl.CostEstimate(
            flops=2 * 3 * N * H * WC * (2 * WC + WO),
            transcendentals=0,
            bytes_accessed=(6 * N * H * WC * 2 + N * H * WO * 4
                            + int(w1t.size + w2t.size + w3t.size) * 2)),
    )(l1, c1, r1, l2, c2, w1t, w2t, w3t)


# --------------------------- pure-JAX reference --------------------------------

def _conv3x3_ref(x_nhwc, w_hwio, relu):
    # Same numerics as the kernels: bf16 operands, f32 accumulation.
    out = lax.conv_general_dilated(
        x_nhwc.astype(jnp.bfloat16), w_hwio.astype(jnp.bfloat16),
        window_strides=(1, 1), padding="SAME",
        dimension_numbers=("NHWC", "HWIO", "NHWC"),
        preferred_element_type=jnp.float32)
    return jnp.maximum(out, 0.0) if relu else out


def _shift_cat_ref(left, center, right, fold):
    return jnp.concatenate(
        [right[..., :fold], left[..., fold:2 * fold], center[..., 2 * fold:]],
        axis=-1)


# ------------------------------ module glue ------------------------------------

def pixel_shuffle2_to_nchw(x_nhwc, out_ch):
    """PixelShuffle(2) with torch channel ordering; NHWC (C=out_ch*4) -> NCHW."""
    N, H, W, _ = x_nhwc.shape
    x = x_nhwc.reshape(N, H, W, out_ch, 2, 2)
    x = jnp.transpose(x, (0, 3, 1, 4, 2, 5))            # N, out_ch, H, 2, W, 2
    return x.reshape(N, out_ch, 2 * H, 2 * W)


class UpBlockStream:
    """Streaming UpBlock state machine mirroring the torch module.

    forward(x) takes NCHW frames; the first two calls return None (warm-up of
    the two MemShiftConvs), later calls return (N, out_ch, 2H, 2W) NCHW output.
    Per-frame math / layout is supplied via preprocess / warmup_step / fused_step.
    """

    def __init__(self, preprocess, warmup_step, fused_step):
        self.preprocess = preprocess
        self.warmup_step = warmup_step
        self.fused_step = fused_step
        self.left1 = self.center1 = None     # memconv.c1 state (input frames)
        self.left2 = self.center2 = None     # memconv.c2 state (c1 outputs)

    def forward(self, x_nchw):
        if x_nchw is None:
            # TODO(synk): torch's `input_right is None` end-of-stream flush path
            # (zero-center special case / NotImplementedError) is not implemented.
            raise NotImplementedError
        x = self.preprocess(x_nchw)
        if self.center1 is None:                         # warm-up frame 0
            self.left1, self.center1 = jnp.zeros_like(x), x
            return None
        if self.center2 is None:                         # warm-up frame 1
            y = self.warmup_step(self.left1, self.center1, x)
            self.left1, self.center1 = self.center1, x
            self.left2, self.center2 = jnp.zeros_like(y), y
            return None
        y, out = self.fused_step(self.left1, self.center1, x,
                                 self.left2, self.center2)
        self.left1, self.center1 = self.center1, x
        self.left2, self.center2 = self.center2, y
        return out


def make_pallas_steps(w1, w2, w3, in_ch, out_ch, H, W):
    # Block-banded bf16 weights (dx taps + SAME W-padding folded in), one per dy.
    w1t = toeplitz_weights(w1, W)                 # (3, W*in_ch, W*in_ch)
    w2t = toeplitz_weights(w2, W)
    w3t = toeplitz_weights(w3, W)                 # (3, W*in_ch, W*4*out_ch)

    def preprocess(x_nchw):
        # NCHW f32 -> lane-dense (N, H, W*in_ch) bf16 streaming state.
        n = x_nchw.shape[0]
        x = jnp.transpose(x_nchw, (0, 2, 3, 1))           # NHWC (contiguous)
        return x.reshape(n, H, W * in_ch).astype(jnp.bfloat16)

    def warmup(l, c, r):
        return shiftconv_pallas(l, c, r, w1t, cin=in_ch)

    def fused(l1, c1, r1, l2, c2):
        y, o = upblock_fused_pallas(l1, c1, r1, l2, c2, w1t, w2t, w3t, cin=in_ch)
        n = o.shape[0]
        out = pixel_shuffle2_to_nchw(o.reshape(n, H, W, 4 * out_ch), out_ch)
        return y, out

    return preprocess, warmup, fused


def make_ref_steps(w1, w2, w3, in_ch, out_ch):
    fold = in_ch // 8

    def preprocess(x_nchw):
        return jnp.transpose(x_nchw, (0, 2, 3, 1))        # NHWC f32

    def warmup(l, c, r):
        return _conv3x3_ref(_shift_cat_ref(l, c, r, fold), w1, relu=True)

    def fused(l1, c1, r1, l2, c2):
        y = _conv3x3_ref(_shift_cat_ref(l1, c1, r1, fold), w1, relu=True)
        z = _conv3x3_ref(_shift_cat_ref(l2, c2, y, fold), w2, relu=True)
        o = _conv3x3_ref(z, w3, relu=False)
        return y, pixel_shuffle2_to_nchw(o, out_ch)

    return preprocess, warmup, fused


# --------------------------------- main ----------------------------------------

if __name__ == "__main__":
    N, in_ch, out_ch, H, W = 2, 8, 4, 16, 16              # W*in_ch = 128 (lane-dense)

    root = jax.random.PRNGKey(0)
    wkey, xkey = jax.random.split(root)
    k1, k2, k3 = jax.random.split(wkey, 3)
    # Deterministic synthetic HWIO weights (torch (cout,cin,kh,kw) permuted to (2,3,1,0)).
    w1 = 0.1 * jax.random.normal(k1, (3, 3, in_ch, in_ch), jnp.float32)
    w2 = 0.1 * jax.random.normal(k2, (3, 3, in_ch, in_ch), jnp.float32)
    w3 = 0.1 * jax.random.normal(k3, (3, 3, in_ch, 4 * out_ch), jnp.float32)

    frames = [
        jax.random.normal(jax.random.fold_in(xkey, t), (N, in_ch, H, W), jnp.float32)
        for t in range(4)
    ]

    p_pre, p_warm, p_fused = make_pallas_steps(w1, w2, w3, in_ch, out_ch, H, W)
    r_pre, r_warm, r_fused = make_ref_steps(w1, w2, w3, in_ch, out_ch)

    block = UpBlockStream(p_pre, p_warm, p_fused)          # Pallas kernels
    refblk = UpBlockStream(r_pre, r_warm, r_fused)         # pure-JAX reference

    n_outputs = 0
    for f in frames:
        out = block.forward(f)
        ref = refblk.forward(f)
        assert (out is None) == (ref is None)
        if out is not None:
            out = jax.block_until_ready(out)
            assert out.shape == (N, out_ch, 2 * H, 2 * W)
            # bf16 MXU operands / bf16 streaming state in both paths.
            assert jnp.allclose(out, ref, atol=2e-2, rtol=2e-2), "mismatch vs reference"
            n_outputs += 1

    # First two streaming calls return None (memory warm-up), last two produce outputs.
    assert n_outputs == 2
    print("KERNEL_OK")
</pallas_src>

<mosaic_0001>
module attributes {stable_mosaic.version = 11 : i64} {
  func.func @_shiftconv_kernel(%arg0: i32, %arg1: memref<2x16x128xbf16, #tpu.memory_space<vmem>>, %arg2: memref<2x16x128xbf16, #tpu.memory_space<vmem>>, %arg3: memref<2x16x128xbf16, #tpu.memory_space<vmem>>, %arg4: memref<3x128x128xbf16, #tpu.memory_space<vmem>>, %arg5: memref<2x16x128xbf16, #tpu.memory_space<vmem>>, %arg6: memref<2x18x128xbf16, #tpu.memory_space<vmem>>) attributes {dimension_semantics = [#tpu.dimension_semantics<arbitrary>], iteration_bounds = array<i64: 1>, scalar_prefetch = 0 : i64, scratch_operands = 1 : i64, tpu.core_type = #tpu.core_type<tc>, window_params = [{pipeline_mode = #tpu.pipeline_mode<synchronous>, transform_indices = @transform_0, window_bounds = array<i64: 2, 16, 128>}, {pipeline_mode = #tpu.pipeline_mode<synchronous>, transform_indices = @transform_1, window_bounds = array<i64: 2, 16, 128>}, {pipeline_mode = #tpu.pipeline_mode<synchronous>, transform_indices = @transform_2, window_bounds = array<i64: 2, 16, 128>}, {pipeline_mode = #tpu.pipeline_mode<synchronous>, transform_indices = @transform_3, window_bounds = array<i64: 3, 128, 128>}, {pipeline_mode = #tpu.pipeline_mode<synchronous>, transform_indices = @transform_4, window_bounds = array<i64: 2, 16, 128>}]} {
    %0 = tpu.iota {dimensions = array<i32: 2>} : vector<2x16x128xi32>
    %c7_i32 = arith.constant 7 : i32
    %1 = vector.broadcast %c7_i32 : i32 to vector<2x16x128xi32>
    %2 = arith.andi %0, %1 : vector<2x16x128xi32>
    %c1_i32 = arith.constant 1 : i32
    %3 = vector.broadcast %c1_i32 : i32 to vector<2x16x128xi32>
    %4 = arith.cmpi slt, %2, %3 : vector<2x16x128xi32>
    %c1_i32_0 = arith.constant 1 : i32
    %5 = vector.broadcast %c1_i32_0 : i32 to vector<2x16x128xi32>
    %6 = arith.cmpi sge, %2, %5 : vector<2x16x128xi32>
    %c2_i32 = arith.constant 2 : i32
    %7 = vector.broadcast %c2_i32 : i32 to vector<2x16x128xi32>
    %8 = arith.cmpi slt, %2, %7 : vector<2x16x128xi32>
    %9 = arith.andi %6, %8 : vector<2x16x128xi1>
    %cst = arith.constant 0.000000e+00 : bf16
    %10 = vector.broadcast %cst : bf16 to vector<2x1x128xbf16>
    %c0 = arith.constant 0 : index
    %c0_1 = arith.constant 0 : index
    %c0_2 = arith.constant 0 : index
    %11 = vector.load %arg6[%c0, %c0_1, %c0_2] : memref<2x18x128xbf16, #tpu.memory_space<vmem>>, vector<2x1x128xbf16>
    tpu.vector_store %arg6[%c0, %c0_1, %c0_2], %10 {strides = array<i32>} : memref<2x18x128xbf16, #tpu.memory_space<vmem>>, vector<2x1x128xbf16>,
    %c0_3 = arith.constant 0 : index
    %c17 = arith.constant 17 : index
    %c0_4 = arith.constant 0 : index
    %12 = vector.load %arg6[%c0_3, %c17, %c0_4] : memref<2x18x128xbf16, #tpu.memory_space<vmem>>, vector<2x1x128xbf16>
    tpu.vector_store %arg6[%c0_3, %c17, %c0_4], %10 {strides = array<i32>} : memref<2x18x128xbf16, #tpu.memory_space<vmem>>, vector<2x1x128xbf16>,
    %c0_5 = arith.constant 0 : index
    %c0_6 = arith.constant 0 : index
    %c0_7 = arith.constant 0 : index
    %13 = vector.load %arg3[%c0_5, %c0_6, %c0_7] : memref<2x16x128xbf16, #tpu.memory_space<vmem>>, vector<2x16x128xbf16>
    %c0_8 = arith.constant 0 : index
    %c0_9 = arith.constant 0 : index
    %c0_10 = arith.constant 0 : index
    %14 = vector.load %arg1[%c0_8, %c0_9, %c0_10] : memref<2x16x128xbf16, #tpu.memory_space<vmem>>, vector<2x16x128xbf16>
    %c0_11 = arith.constant 0 : index
    %c0_12 = arith.constant 0 : index
    %c0_13 = arith.constant 0 : index
    %15 = vector.load %arg2[%c0_11, %c0_12, %c0_13] : memref<2x16x128xbf16, #tpu.memory_space<vmem>>, vector<2x16x128xbf16>
    %16 = arith.select %9, %14, %15 : vector<2x16x128xi1>, vector<2x16x128xbf16>
    %17 = arith.select %4, %13, %16 : vector<2x16x128xi1>, vector<2x16x128xbf16>
    %c0_14 = arith.constant 0 : index
    %c1 = arith.constant 1 : index
    %c0_15 = arith.constant 0 : index
    %18 = vector.load %arg6[%c0_14, %c1, %c0_15] : memref<2x18x128xbf16, #tpu.memory_space<vmem>>, vector<2x16x128xbf16>
    tpu.vector_store %arg6[%c0_14, %c1, %c0_15], %17 {strides = array<i32>} : memref<2x18x128xbf16, #tpu.memory_space<vmem>>, vector<2x16x128xbf16>,
    %cst_16 = arith.constant 0.000000e+00 : f32
    %19 = vector.broadcast %cst_16 : f32 to vector<32x128xf32>
    %c0_17 = arith.constant 0 : index
    %c0_18 = arith.constant 0 : index
    %c0_19 = arith.constant 0 : index
    %20 = vector.load %arg6[%c0_17, %c0_18, %c0_19] : memref<2x18x128xbf16, #tpu.memory_space<vmem>>, vector<2x16x128xbf16>
    %21 = vector.shape_cast %20 : vector<2x16x128xbf16> to vector<32x128xbf16>
    %c0_20 = arith.constant 0 : index
    %c0_21 = arith.constant 0 : index
    %c0_22 = arith.constant 0 : index
    %22 = vector.load %arg4[%c0_20, %c0_21, %c0_22] : memref<3x128x128xbf16, #tpu.memory_space<vmem>>, vector<1x128x128xbf16>
    %23 = vector.shape_cast %22 : vector<1x128x128xbf16> to vector<128x128xbf16>
    %cst_23 = arith.constant dense<0.000000e+00> : vector<32x128xf32>
    %24 = tpu.matmul %21, %23, %cst_23 {dimension_numbers = #tpu.dot_dimension_numbers<[1], [0], [0], [1], [0, 0, 1, 1], [], []>} : vector<32x128xbf16>, vector<128x128xbf16>, vector<32x128xf32> -> vector<32x128xf32>
    %25 = arith.addf %19, %24 : vector<32x128xf32>
    %c0_24 = arith.constant 0 : index
    %c1_25 = arith.constant 1 : index
    %c0_26 = arith.constant 0 : index
    %26 = vector.load %arg6[%c0_24, %c1_25, %c0_26] : memref<2x18x128xbf16, #tpu.memory_space<vmem>>, vector<2x16x128xbf16>
    %27 = vector.shape_cast %26 : vector<2x16x128xbf16> to vector<32x128xbf16>
    %c1_27 = arith.constant 1 : index
    %c0_28 = arith.constant 0 : index
    %c0_29 = arith.constant 0 : index
    %28 = vector.load %arg4[%c1_27, %c0_28, %c0_29] : memref<3x128x128xbf16, #tpu.memory_space<vmem>>, vector<1x128x128xbf16>
    %29 = vector.shape_cast %28 : vector<1x128x128xbf16> to vector<128x128xbf16>
    %cst_30 = arith.constant dense<0.000000e+00> : vector<32x128xf32>
    %30 = tpu.matmul %27, %29, %cst_30 {dimension_numbers = #tpu.dot_dimension_numbers<[1], [0], [0], [1], [0, 0, 1, 1], [], []>} : vector<32x128xbf16>, vector<128x128xbf16>, vector<32x128xf32> -> vector<32x128xf32>
    %31 = arith.addf %25, %30 : vector<32x128xf32>
    %c0_31 = arith.constant 0 : index
    %c2 = arith.constant 2 : index
    %c0_32 = arith.constant 0 : index
    %32 = vector.load %arg6[%c0_31, %c2, %c0_32] : memref<2x18x128xbf16, #tpu.memory_space<vmem>>, vector<2x16x128xbf16>
    %33 = vector.shape_cast %32 : vector<2x16x128xbf16> to vector<32x128xbf16>
    %c2_33 = arith.constant 2 : index
    %c0_34 = arith.constant 0 : index
    %c0_35 = arith.constant 0 : index
    %34 = vector.load %arg4[%c2_33, %c0_34, %c0_35] : memref<3x128x128xbf16, #tpu.memory_space<vmem>>, vector<1x128x128xbf16>
    %35 = vector.shape_cast %34 : vector<1x128x128xbf16> to vector<128x128xbf16>
    %cst_36 = arith.constant dense<0.000000e+00> : vector<32x128xf32>
    %36 = tpu.matmul %33, %35, %cst_36 {dimension_numbers = #tpu.dot_dimension_numbers<[1], [0], [0], [1], [0, 0, 1, 1], [], []>} : vector<32x128xbf16>, vector<128x128xbf16>, vector<32x128xf32> -> vector<32x128xf32>
    %37 = arith.addf %31, %36 : vector<32x128xf32>
    %cst_37 = arith.constant 0.000000e+00 : f32
    %38 = vector.broadcast %cst_37 : f32 to vector<32x128xf32>
    %39 = arith.maximumf %37, %38 : vector<32x128xf32>
    %40 = vector.shape_cast %39 : vector<32x128xf32> to vector<2x16x128xf32>
    %41 = arith.truncf %40 : vector<2x16x128xf32> to vector<2x16x128xbf16>
    %c0_38 = arith.constant 0 : index
    %c0_39 = arith.constant 0 : index
    %c0_40 = arith.constant 0 : index
    %42 = vector.load %arg5[%c0_38, %c0_39, %c0_40] : memref<2x16x128xbf16, #tpu.memory_space<vmem>>, vector<2x16x128xbf16>
    tpu.vector_store %arg5[%c0_38, %c0_39, %c0_40], %41 {strides = array<i32>} : memref<2x16x128xbf16, #tpu.memory_space<vmem>>, vector<2x16x128xbf16>,
    return
  }
  func.func @transform_0(%arg0: i32) -> (i32, i32, i32) {
    %c0_i32 = arith.constant 0 : i32
    %c0_i32_0 = arith.constant 0 : i32
    %c0_i32_1 = arith.constant 0 : i32
    %c0_i32_2 = arith.constant 0 : i32
    return %c0_i32, %c0_i32_0, %c0_i32_1 : i32, i32, i32
  }
  func.func @transform_1(%arg0: i32) -> (i32, i32, i32) {
    %c0_i32 = arith.constant 0 : i32
    %c0_i32_0 = arith.constant 0 : i32
    %c0_i32_1 = arith.constant 0 : i32
    %c0_i32_2 = arith.constant 0 : i32
    return %c0_i32, %c0_i32_0, %c0_i32_1 : i32, i32, i32
  }
  func.func @transform_2(%arg0: i32) -> (i32, i32, i32) {
    %c0_i32 = arith.constant 0 : i32
    %c0_i32_0 = arith.constant 0 : i32
    %c0_i32_1 = arith.constant 0 : i32
    %c0_i32_2 = arith.constant 0 : i32
    return %c0_i32, %c0_i32_0, %c0_i32_1 : i32, i32, i32
  }
  func.func @transform_3(%arg0: i32) -> (i32, i32, i32) {
    %c0_i32 = arith.constant 0 : i32
    %c0_i32_0 = arith.constant 0 : i32
    %c0_i32_1 = arith.constant 0 : i32
    %c0_i32_2 = arith.constant 0 : i32
    return %c0_i32, %c0_i32_0, %c0_i32_1 : i32, i32, i32
  }
  func.func @transform_4(%arg0: i32) -> (i32, i32, i32) {
    %c0_i32 = arith.constant 0 : i32
    %c0_i32_0 = arith.constant 0 : i32
    %c0_i32_1 = arith.constant 0 : i32
    %c0_i32_2 = arith.constant 0 : i32
    return %c0_i32, %c0_i32_0, %c0_i32_1 : i32, i32, i32
  }
}

</mosaic_0001>

<llo_original>
// kernel: tpu_custom_call.1
$region0: #{tpu_custom_call.1}
  #allocation0 [shape = 'u32[]', space=smem, size = 0x4, offset = 0x4, fixed_abs, tag = 'smem constant byte address 0x4 - core index']
  #allocation1 [shape = 'u32[144,128]{1,0:T(1,128)}', space=vmem, size = 0x12000, scoped, tag = 'internal scratch']
  #allocation2 [shape = 'bf16[2,18,128]{2,1,0:T(8,128)(2,1)}', space=vmem, size = 0x3000, scoped, tag = 'scratch operand']
  %s0 = inlined_call_operand.hbm [shape: bf16[2,16,128], index: 0, kind: input, shape index: {}]
  %s1 = inlined_call_operand.hbm [shape: bf16[2,16,128], index: 1, kind: input, shape index: {}]
  %s2 = inlined_call_operand.hbm [shape: bf16[2,16,128], index: 2, kind: input, shape index: {}]
  %s3 = inlined_call_operand.hbm [shape: bf16[3,128,128], index: 3, kind: input, shape index: {}]
  %s4 = inlined_call_operand.hbm [shape: bf16[2,16,128], index: 4, kind: output, shape index: {}]
  %s5 = sld [smem:[#allocation0]]
  $region42: #{tpu_custom_call.1} parent=0
    _
  %s7 = ssub.s32 1, %s5
  %s8 = scalar_select 0, %s7, %s5
  $region1: #{tpu_custom_call.1} parent=0
    #allocation3 [shape = 'u8[8192]{0}', space=vmem, size = 0x2000, scoped, tag = 'input window, operand 0, single buffered']
    #allocation4 [shape = 's32[1]{0}', space=sflag, size = 0x4, scoped, tag = 'scoped memory for tpu_custom_call.1']
    #allocation5 [shape = 's32[1]{0}', space=sflag, size = 0x4, scoped, tag = 'scoped memory for tpu_custom_call.1']
    #allocation6 [shape = 'u8[8192]{0}', space=vmem, size = 0x2000, scoped, tag = 'input window, operand 1, single buffered']
    #allocation7 [shape = 's32[1]{0}', space=sflag, size = 0x4, scoped, tag = 'scoped memory for tpu_custom_call.1']
    #allocation8 [shape = 'u8[8192]{0}', space=vmem, size = 0x2000, scoped, tag = 'input window, operand 2, single buffered']
    #allocation9 [shape = 'u8[98304]{0}', space=vmem, size = 0x18000, scoped, tag = 'input window, operand 3, single buffered']
    #allocation10 [shape = 's32[1]{0}', space=sflag, size = 0x4, scoped, tag = 'scoped memory for tpu_custom_call.1']
    #allocation11 [shape = 'u8[8192]{0}', space=vmem, size = 0x2000, scoped, tag = 'output window, operand 0, single buffered']
    %9 = vsyncpa [#allocation4], 0
    %10 = vsyncpa [#allocation7], 0
    %11 = vsyncpa [#allocation10], 0
    %12 = vsyncpa [#allocation5], 0
    // Predicated region
    $region2: #{tpu_custom_call.1} parent=1 // pred_check
      _
    $region3: #{tpu_custom_call.1} parent=1 // pred_check_branch
      %14 = sbr.rel (0) target = $region5
    $region4: #{tpu_custom_call.1} parent=1 // pred_region
      %s16 = ssub.s32 256, 256
      %17 = vsyncadd [#allocation4], %s16
      %s18 = sshll.u32 [#allocation3], 4
      %s19 = int_to_ptr.vmem [resolvable:$true] %s18
      %24 = dma.hbm_to_vmem [thread:$0]  %s0, 256, %s19, [#allocation4], 64, 64, 4
    $region5: #{tpu_custom_call.1} parent=1 // pred_fallthru
      _
    // Predicated region
    $region6: #{tpu_custom_call.1} parent=1 // pred_check
      _
    $region7: #{tpu_custom_call.1} parent=1 // pred_check_branch
      %26 = sbr.rel (0) target = $region9
    $region8: #{tpu_custom_call.1} parent=1 // pred_region
      %s28 = ssub.s32 256, 256
      %29 = vsyncadd [#allocation7], %s28
      %s30 = sshll.u32 [#allocation6], 4
      %s31 = int_to_ptr.vmem [resolvable:$true] %s30
      %36 = dma.hbm_to_vmem [thread:$0]  %s1, 256, %s31, [#allocation7], 64, 64, 4
    $region9: #{tpu_custom_call.1} parent=1 // pred_fallthru
      _
    // Predicated region
    $region10: #{tpu_custom_call.1} parent=1 // pred_check
      _
    $region11: #{tpu_custom_call.1} parent=1 // pred_check_branch
      %38 = sbr.rel (0) target = $region13
    $region12: #{tpu_custom_call.1} parent=1 // pred_region
      %s40 = ssub.s32 256, 256
      %41 = vsyncadd [#allocation7], %s40
      %s42 = sshll.u32 [#allocation8], 4
      %s43 = int_to_ptr.vmem [resolvable:$true] %s42
      %48 = dma.hbm_to_vmem [thread:$0]  %s2, 256, %s43, [#allocation7], 64, 64, 4
    $region13: #{tpu_custom_call.1} parent=1 // pred_fallthru
      _
    // Predicated region
    $region14: #{tpu_custom_call.1} parent=1 // pred_check
      _
    $region15: #{tpu_custom_call.1} parent=1 // pred_check_branch
      %50 = sbr.rel (0) target = $region17
    $region16: #{tpu_custom_call.1} parent=1 // pred_region
      %s52 = ssub.s32 3072, 3072
      %53 = vsyncadd [#allocation10], %s52
      %s54 = sshll.u32 [#allocation9], 4
      %s55 = int_to_ptr.vmem [resolvable:$true] %s54
      %60 = dma.hbm_to_vmem [thread:$0]  %s3, 3072, %s55, [#allocation10], 64, 64, 4
    $region17: #{tpu_custom_call.1} parent=1 // pred_fallthru
      _
    // Predicated region
    $region18: #{tpu_custom_call.1} parent=1 // pred_check
      _
    $region19: #{tpu_custom_call.1} parent=1 // pred_check_branch
      %62 = sbr.rel (0) target = $region21
    $region20: #{tpu_custom_call.1} parent=1 // pred_region
      %63 = dma.done [#allocation4], 256
    $region21: #{tpu_custom_call.1} parent=1 // pred_fallthru
      _
    // Predicated region
    $region22: #{tpu_custom_call.1} parent=1 // pred_check
      _
    $region23: #{tpu_custom_call.1} parent=1 // pred_check_branch
      %65 = sbr.rel (0) target = $region25
    $region24: #{tpu_custom_call.1} parent=1 // pred_region
      %66 = dma.done [#allocation7], 256
    $region25: #{tpu_custom_call.1} parent=1 // pred_fallthru
      _
    // Predicated region
    $region26: #{tpu_custom_call.1} parent=1 // pred_check
      _
    $region27: #{tpu_custom_call.1} parent=1 // pred_check_branch
      %68 = sbr.rel (0) target = $region29
    $region28: #{tpu_custom_call.1} parent=1 // pred_region
      %69 = dma.done [#allocation7], 256
    $region29: #{tpu_custom_call.1} parent=1 // pred_fallthru
      _
    // Predicated region
    $region30: #{tpu_custom_call.1} parent=1 // pred_check
      _
    $region31: #{tpu_custom_call.1} parent=1 // pred_check_branch
      %71 = sbr.rel (0) target = $region33
    $region32: #{tpu_custom_call.1} parent=1 // pred_region
      %72 = dma.done [#allocation10], 3072
    $region33: #{tpu_custom_call.1} parent=1 // pred_fallthru
      _
    %v74 = vlaneseq
    %v75 = vand.u32 %v74, 127
    %v76 = vand.u32 %v75, 7
    %vm77 = vcmp.lt.s32.totalorder %v76, 1
    %vm78 = vcmp.ge.s32.totalorder %v76, 1
    %vm79 = vcmp.lt.s32.totalorder %v76, 2
    %vm80 = vmand %vm78, %vm79
    %vm81 = vcmask 1040384
    %vm82 = vsmask.f32 256
    %vm83 = vmand %vm81, %vm82
    %v84 = vld [vmem:[#allocation2] sm:$0x1]
    %v85 = vsel %vm83, 0, %v84
    %86 = vst [vmem:[#allocation2] sm:$0x1] %v85
    %v87 = vld [vmem:[#allocation2 + $0xc] sm:$0x1]
    %v88 = vsel %vm83, 0, %v87
    %89 = vst [vmem:[#allocation2 + $0xc] sm:$0x1] %v88
    %vm90 = vsmask.f32 7938
    %vm91 = vmand %vm81, %vm90
    %v92 = vld [vmem:[#allocation2 + $0x8] sm:$0x1]
    %v93 = vsel %vm91, 0, %v92
    %94 = vst [vmem:[#allocation2 + $0x8] sm:$0x1] %v93
    %v95 = vld [vmem:[#allocation2 + $0x14] sm:$0x1]
    %v96 = vsel %vm91, 0, %v95
    %97 = vst [vmem:[#allocation2 + $0x14] sm:$0x1] %v96
    %v98 = vld [vmem:[#allocation8] sm:$0xf]
    %v99 = vld [vmem:[#allocation8 + $0x4] sm:$0xf]
    %v100 = vld [vmem:[#allocation8 + $0x8] sm:$0xf]
    %v101 = vld [vmem:[#allocation8 + $0xc] sm:$0xf]
    %v102 = vld [vmem:[#allocation3] sm:$0xf]
    %v103 = vld [vmem:[#allocation3 + $0x4] sm:$0xf]
    %v104 = vld [vmem:[#allocation3 + $0x8] sm:$0xf]
    %v105 = vld [vmem:[#allocation3 + $0xc] sm:$0xf]
    %v106 = vld [vmem:[#allocation6] sm:$0xf]
    %v107 = vld [vmem:[#allocation6 + $0x4] sm:$0xf]
    %v108 = vld [vmem:[#allocation6 + $0x8] sm:$0xf]
    %v109 = vld [vmem:[#allocation6 + $0xc] sm:$0xf]
    %vm110 = vmpackc.low %vm80, %vm80
    %v111 = vsel %vm110, %v102, %v106
    %v112 = vsel %vm110, %v103, %v107
    %v113 = vsel %vm110, %v104, %v108
    %v114 = vsel %vm110, %v105, %v109
    %vm115 = vmpackc.low %vm77, %vm77
    %v116 = vsel %vm115, %v98, %v111
    %v117 = vsel %vm115, %v99, %v112
    %v118 = vsel %vm115, %v100, %v113
    %v119 = vsel %vm115, %v101, %v114
    %vm120 = vsmask.f32 4368
    %vm121 = vmor %vm82, %vm120
    %v123 = vshrl.u32 %v116, 16
    %v125 = vrot.slane %v123, 7
    %v126 = vshll.u32 %v116, 16
    %v128 = vor.u32 %v125, %v126
    %v129 = vrot.slane %v125, 4
    %v131 = vshrl.u32 %v117, 16
    %v133 = vrot.slane %v131, 7
    %v134 = vshll.u32 %v117, 16
    %v136 = vor.u32 %v133, %v134
    %v137 = vsel %vm121, %v129, %v136
    %v138 = vrot.slane %v133, 4
    %v140 = vshrl.u32 %v118, 16
    %v142 = vrot.slane %v140, 7
    %v143 = vshll.u32 %v118, 16
    %v145 = vor.u32 %v142, %v143
    %v146 = vrot.slane %v142, 4
    %v148 = vshrl.u32 %v119, 16
    %v150 = vrot.slane %v148, 7
    %v151 = vshll.u32 %v119, 16
    %v153 = vor.u32 %v150, %v151
    %v154 = vsel %vm121, %v146, %v153
    %v155 = vrot.slane %v150, 4
    %vm162 = vcmask 1043456
    %vm163 = vmand %vm162, %vm90
    %v164 = vld [vmem:[#allocation2] sm:$0xf]
    %v165 = vsel %vm163, %v128, %v164
    %166 = vst [vmem:[#allocation2] sm:$0xf] %v165
    %167 = vst [vmem:[#allocation2 + $0x4] sm:$0xf] %v137
    %v168 = vld [vmem:[#allocation2 + $0x8] sm:$0x1]
    %v169 = vsel %vm83, %v138, %v168
    %170 = vst [vmem:[#allocation2 + $0x8] sm:$0x1] %v169
    %v171 = vld [vmem:[#allocation2 + $0xc] sm:$0xf]
    %v172 = vsel %vm163, %v145, %v171
    %173 = vst [vmem:[#allocation2 + $0xc] sm:$0xf] %v172
    %174 = vst [vmem:[#allocation2 + $0x10] sm:$0xf] %v154
    %v175 = vld [vmem:[#allocation2 + $0x14] sm:$0x1]
    %v176 = vsel %vm83, %v155, %v175
    %177 = vst [vmem:[#allocation2 + $0x14] sm:$0x1] %v176
    %v178 = vld [vmem:[#allocation2] sm:$0xf]
    %v179 = vld [vmem:[#allocation2 + $0x4] sm:$0xf]
    %v180 = vld [vmem:[#allocation2 + $0xc] sm:$0xf]
    %v181 = vld [vmem:[#allocation2 + $0x10] sm:$0xf]
    %v182 = vld [vmem:[#allocation9] sm:$0xf]
    %v183 = vld [vmem:[#allocation9 + $0x4] sm:$0xf]
    %v184 = vld [vmem:[#allocation9 + $0x8] sm:$0xf]
    %v185 = vld [vmem:[#allocation9 + $0xc] sm:$0xf]
    %v186 = vld [vmem:[#allocation9 + $0x10] sm:$0xf]
    %v187 = vld [vmem:[#allocation9 + $0x14] sm:$0xf]
    %v188 = vld [vmem:[#allocation9 + $0x18] sm:$0xf]
    %v189 = vld [vmem:[#allocation9 + $0x1c] sm:$0xf]
    %v190 = vld [vmem:[#allocation9 + $0x20] sm:$0xf]
    %v191 = vld [vmem:[#allocation9 + $0x24] sm:$0xf]
    %v192 = vld [vmem:[#allocation9 + $0x28] sm:$0xf]
    %v193 = vld [vmem:[#allocation9 + $0x2c] sm:$0xf]
    %v194 = vld [vmem:[#allocation9 + $0x30] sm:$0xf]
    %v195 = vld [vmem:[#allocation9 + $0x34] sm:$0xf]
    %v196 = vld [vmem:[#allocation9 + $0x38] sm:$0xf]
    %v197 = vld [vmem:[#allocation9 + $0x3c] sm:$0xf]
    %v198 = vld [vmem:[#allocation2 + $0x8] sm:$0x1]
    %v199 = vld [vmem:[#allocation2 + $0x14] sm:$0x1]
    %vm200 = vsmask.f32 3328
    %vm201 = vsmask.f32 7440
    %vm202 = vmor %vm200, %vm201
    %v204 = vshrl.u32 %v178, 16
    %v206 = vrot.slane %v204, 4
    %v207 = vshll.u32 %v178, 16
    %v209 = vrot.slane %v207, 5
    %v210 = vor.u32 %v206, %v209
    %v211 = vrot.slane %v210, 4
    %v213 = vshll.u32 %v179, 16
    %v215 = vrot.slane %v213, 5
    %v216 = vsel %vm202, %v211, %v215
    %v217 = vshrl.u32 %v179, 16
    %v219 = vrot.slane %v217, 4
    %v220 = vor.u32 %v219, %v215
    %v221 = vrot.slane %v220, 4
    %v223 = vshll.u32 %v198, 16
    %v225 = vrot.slane %v223, 5
    %v226 = vsel %vm202, %v221, %v225
    %v228 = vshrl.u32 %v180, 16
    %v230 = vrot.slane %v228, 4
    %v231 = vshll.u32 %v180, 16
    %v233 = vrot.slane %v231, 5
    %v234 = vor.u32 %v230, %v233
    %v235 = vrot.slane %v234, 4
    %v237 = vshll.u32 %v181, 16
    %v239 = vrot.slane %v237, 5
    %v240 = vsel %vm202, %v235, %v239
    %v241 = vshrl.u32 %v181, 16
    %v243 = vrot.slane %v241, 4
    %v244 = vor.u32 %v243, %v239
    %v245 = vrot.slane %v244, 4
    %v247 = vshll.u32 %v199, 16
    %v249 = vrot.slane %v247, 5
    %v250 = vsel %vm202, %v245, %v249
    %s251 = scalar_lea.vmem [#allocation9], 64
    %v252 = vld [vmem:[%s251] sm:$0xf]
    %v253 = vld [vmem:[%s251 + $0x4] sm:$0xf]
    %v254 = vld [vmem:[%s251 + $0x8] sm:$0xf]
    %v255 = vld [vmem:[%s251 + $0xc] sm:$0xf]
    %v256 = vld [vmem:[%s251 + $0x10] sm:$0xf]
    %v257 = vld [vmem:[%s251 + $0x14] sm:$0xf]
    %v258 = vld [vmem:[%s251 + $0x18] sm:$0xf]
    %v259 = vld [vmem:[%s251 + $0x1c] sm:$0xf]
    %v260 = vld [vmem:[%s251 + $0x20] sm:$0xf]
    %v261 = vld [vmem:[%s251 + $0x24] sm:$0xf]
    %v262 = vld [vmem:[%s251 + $0x28] sm:$0xf]
    %v263 = vld [vmem:[%s251 + $0x2c] sm:$0xf]
    %v264 = vld [vmem:[%s251 + $0x30] sm:$0xf]
    %v265 = vld [vmem:[%s251 + $0x34] sm:$0xf]
    %v266 = vld [vmem:[%s251 + $0x38] sm:$0xf]
    %v267 = vld [vmem:[%s251 + $0x3c] sm:$0xf]
    %v268 = vunpack.c.l.b16 %v216
    %v269 = vunpack.c.l.b16 %v226
    %v270 = vunpack.c.l.b16 %v240
    %v271 = vunpack.c.l.b16 %v250
    %v272 = vpack.c.b16 %v269, %v268
    %v273 = vpack.c.b16 %v271, %v270
    %v292 = vunpack.c.l.b16 %v252
    %v293 = vunpack.c.l.b16 %v253
    %v294 = vunpack.c.l.b16 %v254
    %v295 = vunpack.c.l.b16 %v255
    %v296 = vunpack.c.l.b16 %v256
    %v297 = vunpack.c.l.b16 %v257
    %v298 = vunpack.c.l.b16 %v258
    %v299 = vunpack.c.l.b16 %v259
    %v300 = vunpack.c.l.b16 %v260
    %v301 = vunpack.c.l.b16 %v261
    %v302 = vunpack.c.l.b16 %v262
    %v303 = vunpack.c.l.b16 %v263
    %v304 = vunpack.c.l.b16 %v264
    %v305 = vunpack.c.l.b16 %v265
    %v306 = vunpack.c.l.b16 %v266
    %v307 = vunpack.c.l.b16 %v267
    %v308 = vpack.c.b16 %v293, %v292
    %v309 = vpack.c.b16 %v295, %v294
    %v310 = vpack.c.b16 %v297, %v296
    %v311 = vpack.c.b16 %v299, %v298
    %v312 = vpack.c.b16 %v301, %v300
    %v313 = vpack.c.b16 %v303, %v302
    %v314 = vpack.c.b16 %v305, %v304
    %v315 = vpack.c.b16 %v307, %v306
    %324 = vmatprep.subr.bf16.mxu0 0
    %325 = vmatpush1.bf16.msra.mxu0 %v315
    %326 = vmatprep.subr.bf16.mxu0 0
    %327 = vmatpush1.bf16.msra.mxu0 %v314
    %328 = vmatprep.subr.bf16.mxu0 0
    %329 = vmatpush1.bf16.msra.mxu0 %v313
    %330 = vmatprep.subr.bf16.mxu0 0
    %331 = vmatpush1.bf16.msra.mxu0 %v312
    %332 = vmatprep.subr.bf16.mxu0 0
    %333 = vmatpush1.bf16.msra.mxu0 %v311
    %334 = vmatprep.subr.bf16.mxu0 0
    %335 = vmatpush1.bf16.msra.mxu0 %v310
    %336 = vmatprep.subr.bf16.mxu0 0
    %337 = vmatpush1.bf16.msra.mxu0 %v309
    %338 = vmatprep.subr.bf16.mxu0 0
    %339 = vmatpush1.bf16.msra.mxu0 %v308
    %340 = vmatprep.subr.bf16.mxu0 0
    %341 = vmatpush2.bf16.msra.mxu0 0
    %342 = vmatprep.subr.bf16.mxu0 0
    %343 = vmatpush2.bf16.msra.mxu0 0
    %344 = vmatprep.subr.bf16.mxu0 0
    %345 = vmatpush2.bf16.msra.mxu0 0
    %346 = vmatprep.subr.bf16.mxu0 0
    %347 = vmatpush2.bf16.msra.mxu0 0
    %348 = vmatprep.subr.bf16.mxu0 0
    %349 = vmatpush2.bf16.msra.mxu0 0
    %350 = vmatprep.subr.bf16.mxu0 0
    %351 = vmatpush2.bf16.msra.mxu0 0
    %352 = vmatprep.subr.bf16.mxu0 0
    %353 = vmatpush2.bf16.msra.mxu0 0
    %354 = vmatprep.subr.bf16.mxu0 0
    %355 = vmatpush2.bf16.msra.mxu0 0
    %356 = vmatprep.mubr.bf16.mxu0 0
    %357 = vmatmul.mubr.bf16.gmra.mxu0 %v272
    %v358 = vpop.f32.mrf.mxu0
    %v359 = vadd.f32 0.0, %v358
    %v360 = vpop.f32.mrf.mxu0
    %v361 = vpop.f32.mrf.mxu0
    %v362 = vadd.f32 0.0, %v361
    %v363 = vpop.f32.mrf.mxu0
    %364 = vmatprep.mubr.bf16.mxu0 0
    %365 = vmatmul.mubr.bf16.gmra.mxu0 %v273
    %v366 = vpop.f32.mrf.mxu0
    %v367 = vadd.f32 0.0, %v366
    %v368 = vpop.f32.mrf.mxu0
    %v369 = vpop.f32.mrf.mxu0
    %v370 = vadd.f32 0.0, %v369
    %v371 = vpop.f32.mrf.mxu0
    %372 = vdwg.mxu0
    %v377 = vunpack.c.l.b16 %v178
    %v378 = vunpack.c.l.b16 %v179
    %v379 = vunpack.c.l.b16 %v180
    %v380 = vunpack.c.l.b16 %v181
    %v381 = vpack.c.b16 %v378, %v377
    %v382 = vpack.c.b16 %v380, %v379
    %v401 = vunpack.c.l.b16 %v182
    %v402 = vunpack.c.l.b16 %v183
    %v403 = vunpack.c.l.b16 %v184
    %v404 = vunpack.c.l.b16 %v185
    %v405 = vunpack.c.l.b16 %v186
    %v406 = vunpack.c.l.b16 %v187
    %v407 = vunpack.c.l.b16 %v188
    %v408 = vunpack.c.l.b16 %v189
    %v409 = vunpack.c.l.b16 %v190
    %v410 = vunpack.c.l.b16 %v191
    %v411 = vunpack.c.l.b16 %v192
    %v412 = vunpack.c.l.b16 %v193
    %v413 = vunpack.c.l.b16 %v194
    %v414 = vunpack.c.l.b16 %v195
    %v415 = vunpack.c.l.b16 %v196
    %v416 = vunpack.c.l.b16 %v197
    %v417 = vpack.c.b16 %v402, %v401
    %v418 = vpack.c.b16 %v404, %v403
    %v419 = vpack.c.b16 %v406, %v405
    %v420 = vpack.c.b16 %v408, %v407
    %v421 = vpack.c.b16 %v410, %v409
    %v422 = vpack.c.b16 %v412, %v411
    %v423 = vpack.c.b16 %v414, %v413
    %v424 = vpack.c.b16 %v416, %v415
    %433 = vmatprep.subr.bf16.mxu0 0
    %434 = vmatpush1.bf16.msra.mxu0 %v424
    %435 = vmatprep.subr.bf16.mxu0 0
    %436 = vmatpush1.bf16.msra.mxu0 %v423
    %437 = vmatprep.subr.bf16.mxu0 0
    %438 = vmatpush1.bf16.msra.mxu0 %v422
    %439 = vmatprep.subr.bf16.mxu0 0
    %440 = vmatpush1.bf16.msra.mxu0 %v421
    %441 = vmatprep.subr.bf16.mxu0 0
    %442 = vmatpush1.bf16.msra.mxu0 %v420
    %443 = vmatprep.subr.bf16.mxu0 0
    %444 = vmatpush1.bf16.msra.mxu0 %v419
    %445 = vmatprep.subr.bf16.mxu0 0
    %446 = vmatpush1.bf16.msra.mxu0 %v418
    %447 = vmatprep.subr.bf16.mxu0 0
    %448 = vmatpush1.bf16.msra.mxu0 %v417
    %449 = vmatprep.subr.bf16.mxu0 0
    %450 = vmatpush2.bf16.msra.mxu0 0
    %451 = vmatprep.subr.bf16.mxu0 0
    %452 = vmatpush2.bf16.msra.mxu0 0
    %453 = vmatprep.subr.bf16.mxu0 0
    %454 = vmatpush2.bf16.msra.mxu0 0
    %455 = vmatprep.subr.bf16.mxu0 0
    %456 = vmatpush2.bf16.msra.mxu0 0
    %457 = vmatprep.subr.bf16.mxu0 0
    %458 = vmatpush2.bf16.msra.mxu0 0
    %459 = vmatprep.subr.bf16.mxu0 0
    %460 = vmatpush2.bf16.msra.mxu0 0
    %461 = vmatprep.subr.bf16.mxu0 0
    %462 = vmatpush2.bf16.msra.mxu0 0
    %463 = vmatprep.subr.bf16.mxu0 0
    %464 = vmatpush2.bf16.msra.mxu0 0
    %465 = vmatprep.mubr.bf16.mxu0 0
    %466 = vmatmul.mubr.bf16.gmra.mxu0 %v381
    %v467 = vpop.f32.mrf.mxu0
    %v468 = vadd.f32 %v359, %v467
    %v469 = vpop.f32.mrf.mxu0
    %v470 = vpop.f32.mrf.mxu0
    %v471 = vadd.f32 %v362, %v470
    %v472 = vpop.f32.mrf.mxu0
    %473 = vmatprep.mubr.bf16.mxu0 0
    %474 = vmatmul.mubr.bf16.gmra.mxu0 %v382
    %v475 = vpop.f32.mrf.mxu0
    %v476 = vadd.f32 %v367, %v475
    %v477 = vpop.f32.mrf.mxu0
    %v478 = vpop.f32.mrf.mxu0
    %v479 = vadd.f32 %v370, %v478
    %v480 = vpop.f32.mrf.mxu0
    %481 = vdwg.mxu0
    %v482 = vld [vmem:[#allocation2] sm:$0xe]
    %v483 = vld [vmem:[#allocation2 + $0xc] sm:$0xe]
    %vm488 = vcmask 1042432
    %vm489 = vcmask 1046532
    %vm490 = vmor %vm488, %vm489
    %v491 = vrot.slane %v482, 5
    %v492 = vrot.slane %v491, 4
    %v493 = vrot.slane %v179, 5
    %v494 = vsel %vm490, %v492, %v493
    %v495 = vrot.slane %v493, 4
    %v496 = vrot.slane %v198, 5
    %v497 = vsel %vm490, %v495, %v496
    %v498 = vrot.slane %v483, 5
    %v499 = vrot.slane %v498, 4
    %v500 = vrot.slane %v181, 5
    %v501 = vsel %vm490, %v499, %v500
    %v502 = vrot.slane %v500, 4
    %v503 = vrot.slane %v199, 5
    %v504 = vsel %vm490, %v502, %v503
    %s505 = scalar_lea.vmem [#allocation9], 128
    %v506 = vld [vmem:[%s505] sm:$0xf]
    %v507 = vld [vmem:[%s505 + $0x4] sm:$0xf]
    %v508 = vld [vmem:[%s505 + $0x8] sm:$0xf]
    %v509 = vld [vmem:[%s505 + $0xc] sm:$0xf]
    %v510 = vld [vmem:[%s505 + $0x10] sm:$0xf]
    %v511 = vld [vmem:[%s505 + $0x14] sm:$0xf]
    %v512 = vld [vmem:[%s505 + $0x18] sm:$0xf]
    %v513 = vld [vmem:[%s505 + $0x1c] sm:$0xf]
    %v514 = vld [vmem:[%s505 + $0x20] sm:$0xf]
    %v515 = vld [vmem:[%s505 + $0x24] sm:$0xf]
    %v516 = vld [vmem:[%s505 + $0x28] sm:$0xf]
    %v517 = vld [vmem:[%s505 + $0x2c] sm:$0xf]
    %v518 = vld [vmem:[%s505 + $0x30] sm:$0xf]
    %v519 = vld [vmem:[%s505 + $0x34] sm:$0xf]
    %v520 = vld [vmem:[%s505 + $0x38] sm:$0xf]
    %v521 = vld [vmem:[%s505 + $0x3c] sm:$0xf]
    %v522 = vunpack.c.l.b16 %v494
    %v523 = vunpack.c.l.b16 %v497
    %v524 = vunpack.c.l.b16 %v501
    %v525 = vunpack.c.l.b16 %v504
    %v526 = vpack.c.b16 %v523, %v522
    %v527 = vpack.c.b16 %v525, %v524
    %v546 = vunpack.c.l.b16 %v506
    %v547 = vunpack.c.l.b16 %v507
    %v548 = vunpack.c.l.b16 %v508
    %v549 = vunpack.c.l.b16 %v509
    %v550 = vunpack.c.l.b16 %v510
    %v551 = vunpack.c.l.b16 %v511
    %v552 = vunpack.c.l.b16 %v512
    %v553 = vunpack.c.l.b16 %v513
    %v554 = vunpack.c.l.b16 %v514
    %v555 = vunpack.c.l.b16 %v515
    %v556 = vunpack.c.l.b16 %v516
    %v557 = vunpack.c.l.b16 %v517
    %v558 = vunpack.c.l.b16 %v518
    %v559 = vunpack.c.l.b16 %v519
    %v560 = vunpack.c.l.b16 %v520
    %v561 = vunpack.c.l.b16 %v521
    %v562 = vpack.c.b16 %v547, %v546
    %v563 = vpack.c.b16 %v549, %v548
    %v564 = vpack.c.b16 %v551, %v550
    %v565 = vpack.c.b16 %v553, %v552
    %v566 = vpack.c.b16 %v555, %v554
    %v567 = vpack.c.b16 %v557, %v556
    %v568 = vpack.c.b16 %v559, %v558
    %v569 = vpack.c.b16 %v561, %v560
    %578 = vmatprep.subr.bf16.mxu0 0
    %579 = vmatpush1.bf16.msra.mxu0 %v569
    %580 = vmatprep.subr.bf16.mxu0 0
    %581 = vmatpush1.bf16.msra.mxu0 %v568
    %582 = vmatprep.subr.bf16.mxu0 0
    %583 = vmatpush1.bf16.msra.mxu0 %v567
    %584 = vmatprep.subr.bf16.mxu0 0
    %585 = vmatpush1.bf16.msra.mxu0 %v566
    %586 = vmatprep.subr.bf16.mxu0 0
    %587 = vmatpush1.bf16.msra.mxu0 %v565
    %588 = vmatprep.subr.bf16.mxu0 0
    %589 = vmatpush1.bf16.msra.mxu0 %v564
    %590 = vmatprep.subr.bf16.mxu0 0
    %591 = vmatpush1.bf16.msra.mxu0 %v563
    %592 = vmatprep.subr.bf16.mxu0 0
    %593 = vmatpush1.bf16.msra.mxu0 %v562
    %594 = vmatprep.subr.bf16.mxu0 0
    %595 = vmatpush2.bf16.msra.mxu0 0
    %596 = vmatprep.subr.bf16.mxu0 0
    %597 = vmatpush2.bf16.msra.mxu0 0
    %598 = vmatprep.subr.bf16.mxu0 0
    %599 = vmatpush2.bf16.msra.mxu0 0
    %600 = vmatprep.subr.bf16.mxu0 0
    %601 = vmatpush2.bf16.msra.mxu0 0
    %602 = vmatprep.subr.bf16.mxu0 0
    %603 = vmatpush2.bf16.msra.mxu0 0
    %604 = vmatprep.subr.bf16.mxu0 0
    %605 = vmatpush2.bf16.msra.mxu0 0
    %606 = vmatprep.subr.bf16.mxu0 0
    %607 = vmatpush2.bf16.msra.mxu0 0
    %608 = vmatprep.subr.bf16.mxu0 0
    %609 = vmatpush2.bf16.msra.mxu0 0
    %610 = vmatprep.mubr.bf16.mxu0 0
    %611 = vmatmul.mubr.bf16.gmra.mxu0 %v526
    %v612 = vpop.f32.mrf.mxu0
    %v613 = vadd.f32 0.0, %v612
    %v614 = vpop.f32.mrf.mxu0
    %v615 = vpop.f32.mrf.mxu0
    %v616 = vadd.f32 0.0, %v615
    %v617 = vpop.f32.mrf.mxu0
    %618 = vmatprep.mubr.bf16.mxu0 0
    %619 = vmatmul.mubr.bf16.gmra.mxu0 %v527
    %v620 = vpop.f32.mrf.mxu0
    %v621 = vadd.f32 0.0, %v620
    %v622 = vpop.f32.mrf.mxu0
    %v623 = vpop.f32.mrf.mxu0
    %v624 = vadd.f32 0.0, %v623
    %v625 = vpop.f32.mrf.mxu0
    %626 = vdwg.mxu0
    %v627 = vadd.f32 %v468, %v613
    %v628 = vadd.f32 %v471, %v616
    %v629 = vadd.f32 %v476, %v621
    %v630 = vadd.f32 %v479, %v624
    %v631 = vmax.f32 %v627, 0.0
    %v632 = vmax.f32 %v628, 0.0
    %v633 = vmax.f32 %v629, 0.0
    %v634 = vmax.f32 %v630, 0.0
    %v635 = vpack.c.bf16 %v632, %v631
    %v636 = vpack.c.bf16 %v634, %v633
    %v639 = vunpack.c.l.b16 %v635
    %v640 = vunpack.c.h.b16 %v635
    %v641 = vunpack.c.l.b16 %v636
    %v642 = vunpack.c.h.b16 %v636
    %v643 = vpack.c.b16 %v639, %v639
    %v644 = vpack.c.b16 %v640, %v640
    %v645 = vpack.c.b16 %v641, %v641
    %v646 = vpack.c.b16 %v642, %v642
    %651 = vst [vmem:[#allocation11] sm:$0xf] %v643
    %652 = vst [vmem:[#allocation11 + $0x4] sm:$0xf] %v644
    %653 = vst [vmem:[#allocation11 + $0x8] sm:$0xf] %v645
    %654 = vst [vmem:[#allocation11 + $0xc] sm:$0xf] %v646
    // Predicated region
    $region34: #{tpu_custom_call.1} parent=1 // pred_check
      _
    $region35: #{tpu_custom_call.1} parent=1 // pred_check_branch
      %656 = sbr.rel (0) target = $region37
    $region36: #{tpu_custom_call.1} parent=1 // pred_region
      %s658 = ssub.s32 256, 256
      %659 = vsyncadd [#allocation5], %s658
      %s660 = sshll.u32 [#allocation11], 4
      %s661 = int_to_ptr.vmem [resolvable:$true] %s660
      %666 = dma.vmem_to_hbm [thread:$0]  %s661, 256, %s4, [#allocation5], 64, 64, 4
    $region37: #{tpu_custom_call.1} parent=1 // pred_fallthru
      _
    // Predicated region
    $region38: #{tpu_custom_call.1} parent=1 // pred_check
      _
    $region39: #{tpu_custom_call.1} parent=1 // pred_check_branch
      %668 = sbr.rel (0) target = $region41
    $region40: #{tpu_custom_call.1} parent=1 // pred_region
      %669 = dma.done [#allocation5], 256
    $region41: #{tpu_custom_call.1} parent=1 // pred_fallthru
      _
    %670 = vsyncpa [#allocation4], 1
    %671 = vsyncpa [#allocation7], 1
    %672 = vsyncpa [#allocation10], 1
    %673 = vsyncpa [#allocation5], 1

</llo_original>
